<compile_context>
chip_gen: v7x
topology: tpu7x:2x2x1
jax: 0.10.0
libtpu: 0.0.40
codegen_flags: <defaults>
</compile_context>

<pallas_src>
import math

import jax
import jax.numpy as jnp
import numpy as np
from jax.experimental import pallas as pl
from jax.experimental.pallas import tpu as pltpu

KSIZE = 4
BN_EPS = 1e-5
LRELU_SLOPE = 0.2
LANE = 128
TM_ALIGN = 16                      # bf16 packs 16 sublanes per vreg
MIN_TM = 256
MAX_TM = 4096
VMEM_BUDGET = 40 * 1024 * 1024     # stay well under v7x's 64 MiB per-TC VMEM
VMEM_CAP = 48 * 1024 * 1024


def _round_up(x, m):
    return ((x + m - 1) // m) * m


# ---------------------------------------------------------------------------
# Kernel 1: conv tile on the MXU + per-tile partial BatchNorm statistics.
# ---------------------------------------------------------------------------
def _conv_stats_kernel(patches_ref, w_ref, conv_ref, stats_ref):
    conv = jnp.dot(patches_ref[...], w_ref[...],
                   preferred_element_type=jnp.float32)        # [tm, C_pad] f32
    conv_ref[...] = conv.astype(conv_ref.dtype)               # bf16 stash -> HBM
    # Per-tile partial sums.  Zero-padded rows contribute exactly 0, so the
    # statistics (later divided by the true M) stay exact.
    sums = jnp.sum(conv, axis=0, keepdims=True)               # [1, C_pad]
    sumsq = jnp.sum(conv * conv, axis=0, keepdims=True)       # [1, C_pad]
    pad = jnp.zeros((6, conv.shape[1]), jnp.float32)
    stats_ref[0] = jnp.concatenate([sums, sumsq, pad], axis=0)  # [8, C_pad]


# ---------------------------------------------------------------------------
# Kernel 2: folded BatchNorm affine + LeakyReLU on the stashed conv tiles.
# ---------------------------------------------------------------------------
def _bn_lrelu_kernel(conv_ref, s_ref, t_ref, out_ref):
    y = conv_ref[...].astype(jnp.float32) * s_ref[...] + t_ref[...]
    out_ref[...] = jnp.where(y >= 0.0, y, LRELU_SLOPE * y)


def block_forward(x, weight, bias, gamma, beta, stride=2, tile_m=None,
                  mxu_dtype=jnp.bfloat16):
    """Forward pass of `block` (Conv2d k=4 -> BatchNorm2d -> LeakyReLU(0.2)).

    x:      [N, C_in, H, W]  (NCHW, like PyTorch)
    weight: [C_out, C_in, 4, 4];  bias/gamma/beta: [C_out]
    returns [N, C_out, H_out, W_out] float32
    """
    del bias  # exactly cancelled by the BatchNorm mean subtraction

    N, C_in, H, W = x.shape
    C_out = weight.shape[0]
    Ho = (H - KSIZE) // stride + 1
    Wo = (W - KSIZE) // stride + 1
    M = N * Ho * Wo
    K = C_in * KSIZE * KSIZE
    itemsize = jnp.dtype(mxu_dtype).itemsize

    # im2col as one fused XLA op on a bf16 input (half the intermediate HBM
    # traffic of f32 patches).  Channel ordering (c*16 + kh*4 + kw) matches
    # weight.reshape(C_out, K).
    # TODO(synk): fuse im2col fully into the kernel (stream NHWC rows with a
    # halo and build [tm, K] patch blocks in VMEM) to avoid materializing the
    # 4x-sized patch array at all.
    patches = jax.lax.conv_general_dilated_patches(
        x.astype(mxu_dtype), (KSIZE, KSIZE), (stride, stride), "VALID",
        dimension_numbers=("NCHW", "OIHW", "NHWC"))           # [N, Ho, Wo, K]
    patches = patches.reshape(M, K)

    w2d = weight.astype(jnp.float32).reshape(C_out, K).T.astype(mxu_dtype)

    # K: keep unpadded below one lane tile (full-dim blocks are legal, and
    # padding small K would double the dominant patch stream for zero work).
    K_eff = K if K < LANE else _round_up(K, LANE)
    C_pad = _round_up(max(C_out, LANE), LANE)

    # Row tile: target a ~2 MiB patch tile, clamped, multiple of 16 (bf16).
    if tile_m is None:
        tile_m = (2 * 1024 * 1024) // max(K_eff * itemsize, 1)
    tm = max(MIN_TM, min(int(tile_m), MAX_TM))
    tm = min(tm, _round_up(M, TM_ALIGN))
    tm = _round_up(tm, TM_ALIGN)

    def _call1_vmem(tm_):
        return (2 * tm_ * K_eff * itemsize       # patches (double buffer)
                + 2 * K_eff * C_pad * itemsize   # weights (worst case 2 bufs)
                + 2 * tm_ * C_pad * itemsize     # conv stash (double buffer)
                + 2 * 8 * C_pad * 4)             # stats    (double buffer)

    def _call2_vmem(tm_):
        return (2 * tm_ * C_pad * itemsize       # conv stash in
                + 2 * tm_ * C_pad * 4            # f32 out
                + 4 * C_pad * 4)                 # s / t

    while tm > MIN_TM and max(_call1_vmem(tm), _call2_vmem(tm)) > VMEM_BUDGET:
        tm = max(MIN_TM, _round_up(tm // 2, TM_ALIGN))
    # TODO(synk): very large C_in*C_out layers would additionally need a
    # K-axis grid split; not required for discriminator-sized blocks.

    M_pad = _round_up(M, tm)
    n_tiles = M_pad // tm

    patches_p = jnp.pad(patches, ((0, M_pad - M), (0, K_eff - K)))
    w_p = jnp.pad(w2d, ((0, K_eff - K), (0, C_pad - C_out)))

    vmem1 = int(min(max(2 * _call1_vmem(tm), 16 * 1024 * 1024), VMEM_CAP))
    vmem2 = int(min(max(2 * _call2_vmem(tm), 16 * 1024 * 1024), VMEM_CAP))

    # ---------------- call 1: conv + partial stats ----------------
    def conv_stats_call(single_buffer_weights):
        w_kwargs = {}
        if single_buffer_weights:
            # Constant index_map -> one resident weight copy is enough.
            w_kwargs["pipeline_mode"] = pl.Buffered(1)
        grid_spec = pltpu.PrefetchScalarGridSpec(
            num_scalar_prefetch=0,
            grid=(n_tiles,),
            in_specs=[
                pl.BlockSpec((tm, K_eff), lambda i: (i, 0)),
                pl.BlockSpec((K_eff, C_pad), lambda i: (0, 0), **w_kwargs),
            ],
            out_specs=[
                pl.BlockSpec((tm, C_pad), lambda i: (i, 0)),
                pl.BlockSpec((1, 8, C_pad), lambda i: (i, 0, 0)),
            ],
        )
        cost = pl.CostEstimate(
            flops=2 * M_pad * K_eff * C_pad,
            transcendentals=0,
            bytes_accessed=(M_pad * K_eff * itemsize
                            + K_eff * C_pad * itemsize
                            + M_pad * C_pad * itemsize
                            + n_tiles * 8 * C_pad * 4),
        )
        return pl.pallas_call(
            _conv_stats_kernel,
            out_shape=(jax.ShapeDtypeStruct((M_pad, C_pad), mxu_dtype),
                       jax.ShapeDtypeStruct((n_tiles, 8, C_pad), jnp.float32)),
            grid_spec=grid_spec,
            compiler_params=pltpu.CompilerParams(
                dimension_semantics=("parallel",),
                vmem_limit_bytes=vmem1),
            cost_estimate=cost,
        )(patches_p, w_p)

    try:
        conv_stash, stats = conv_stats_call(True)
    except Exception:
        # Fallback if pl.Buffered(1) single-buffering is unsupported here.
        conv_stash, stats = conv_stats_call(False)

    # ---------------- tiny XLA glue: fold BN into (s, t) once -------------
    inv_m = 1.0 / float(M)
    sums = jnp.sum(stats[:, 0, :], axis=0)
    sumsq = jnp.sum(stats[:, 1, :], axis=0)
    mean = sums * inv_m
    # TODO(synk): E[x^2]-E[x]^2 in f32 can cancel for huge M / large-mean
    # activations; a Welford-style merge of the per-tile partials would be
    # more robust.  Clamp keeps var non-negative.
    var = jnp.maximum(sumsq * inv_m - mean * mean, 0.0)
    gamma_p = jnp.pad(gamma.astype(jnp.float32), (0, C_pad - C_out))
    beta_p = jnp.pad(beta.astype(jnp.float32), (0, C_pad - C_out))
    scale = gamma_p * jax.lax.rsqrt(var + BN_EPS)
    shift = beta_p - mean * scale
    s2 = scale.reshape(1, C_pad)
    t2 = shift.reshape(1, C_pad)

    # ---------------- call 2: affine + LeakyReLU ----------------
    out2d = pl.pallas_call(
        _bn_lrelu_kernel,
        out_shape=jax.ShapeDtypeStruct((M_pad, C_pad), jnp.float32),
        grid_spec=pltpu.PrefetchScalarGridSpec(
            num_scalar_prefetch=0,
            grid=(n_tiles,),
            in_specs=[
                pl.BlockSpec((tm, C_pad), lambda i: (i, 0)),
                pl.BlockSpec((1, C_pad), lambda i: (0, 0)),
                pl.BlockSpec((1, C_pad), lambda i: (0, 0)),
            ],
            out_specs=pl.BlockSpec((tm, C_pad), lambda i: (i, 0)),
        ),
        compiler_params=pltpu.CompilerParams(
            dimension_semantics=("parallel",),
            vmem_limit_bytes=vmem2),
        cost_estimate=pl.CostEstimate(
            flops=3 * M_pad * C_pad,
            transcendentals=0,
            bytes_accessed=M_pad * C_pad * (itemsize + 4) + 2 * C_pad * 4),
    )(conv_stash, s2, t2)

    # Strip padding; NCHW for PyTorch parity.  (Downstream consumers that take
    # NHWC can use out2d[:M, :C_out].reshape(N, Ho, Wo, C_out) directly and
    # skip this transpose.)
    return out2d[:M, :C_out].reshape(N, Ho, Wo, C_out).transpose(0, 3, 1, 2)


def _reference(x, weight, bias, gamma, beta, stride=2, mxu_dtype=None,
               stash_dtype=None):
    xw = x.astype(jnp.float32)
    ww = weight.astype(jnp.float32)
    if mxu_dtype is not None:
        xw = xw.astype(mxu_dtype).astype(jnp.float32)
        ww = ww.astype(mxu_dtype).astype(jnp.float32)
    conv = jax.lax.conv_general_dilated(
        xw, ww, window_strides=(stride, stride), padding="VALID",
        dimension_numbers=("NCHW", "OIHW", "NCHW"))
    conv = conv + bias[None, :, None, None]
    mean = conv.mean(axis=(0, 2, 3), keepdims=True)
    var = ((conv - mean) ** 2).mean(axis=(0, 2, 3), keepdims=True)
    scale = gamma[None, :, None, None] * jax.lax.rsqrt(var + BN_EPS)
    shift = beta[None, :, None, None] - mean * scale
    if stash_dtype is not None:
        conv = conv.astype(stash_dtype).astype(jnp.float32)
    y = conv * scale + shift
    return jnp.where(y >= 0, y, LRELU_SLOPE * y)


if __name__ == "__main__":
    key = jax.random.PRNGKey(0)
    k_x, k_w, k_b, k_g, k_be = jax.random.split(key, 5)

    N, C_in, C_out, H, W = 2, 4, 8, 16, 16
    stride = 2

    x = jax.random.normal(k_x, (N, C_in, H, W), dtype=jnp.float32)
    fan_in = C_in * KSIZE * KSIZE
    weight = jax.random.normal(k_w, (C_out, C_in, KSIZE, KSIZE),
                               dtype=jnp.float32) * (1.0 / math.sqrt(fan_in))
    bias = jax.random.normal(k_b, (C_out,), dtype=jnp.float32) * 0.1
    gamma = 1.0 + 0.1 * jax.random.normal(k_g, (C_out,), dtype=jnp.float32)
    beta = 0.1 * jax.random.normal(k_be, (C_out,), dtype=jnp.float32)

    out = jax.block_until_ready(
        block_forward(x, weight, bias, gamma, beta, stride=stride))

    # Tight check: reference that mirrors the kernel's mixed precision
    # (bf16 MXU operands, f32 stats, bf16 conv stash, folded affine, bias
    # dropped since it cancels inside BatchNorm).
    ref_tight = jax.block_until_ready(
        _reference(x, weight, jnp.zeros_like(bias), gamma, beta, stride,
                   mxu_dtype=jnp.bfloat16, stash_dtype=jnp.bfloat16))
    assert out.shape == ref_tight.shape, (out.shape, ref_tight.shape)
    np.testing.assert_allclose(np.asarray(out), np.asarray(ref_tight),
                               rtol=2e-3, atol=2e-3)

    # Loose check: full-f32 PyTorch-equivalent reference (bounds the bf16
    # mixed-precision error of the MXU operands and the conv stash).
    ref_f32 = jax.block_until_ready(
        _reference(x, weight, bias, gamma, beta, stride))
    np.testing.assert_allclose(np.asarray(out), np.asarray(ref_f32),
                               rtol=3e-2, atol=3e-2)

    print("KERNEL_OK")
</pallas_src>

<mosaic_0001>
module attributes {stable_mosaic.version = 11 : i64} {
  func.func @_conv_stats_kernel(%arg0: i32, %arg1: memref<112x64xbf16, #tpu.memory_space<vmem>>, %arg2: memref<64x128xbf16, #tpu.memory_space<vmem>>, %arg3: memref<112x128xbf16, #tpu.memory_space<vmem>>, %arg4: memref<1x8x128xf32, #tpu.memory_space<vmem>>) attributes {dimension_semantics = [#tpu.dimension_semantics<parallel>], iteration_bounds = array<i64: 1>, scalar_prefetch = 0 : i64, scratch_operands = 0 : i64, tpu.core_type = #tpu.core_type<tc>, window_params = [{transform_indices = @transform_0, window_bounds = array<i64: 112, 64>}, {pipeline_mode = #tpu.pipeline_mode<synchronous>, transform_indices = @transform_1, window_bounds = array<i64: 64, 128>}, {transform_indices = @transform_2, window_bounds = array<i64: 112, 128>}, {transform_indices = @transform_3, window_bounds = array<i64: 1, 8, 128>}]} {
    %c0 = arith.constant 0 : index
    %c0_0 = arith.constant 0 : index
    %0 = vector.load %arg1[%c0, %c0_0] : memref<112x64xbf16, #tpu.memory_space<vmem>>, vector<112x64xbf16>
    %c0_1 = arith.constant 0 : index
    %c0_2 = arith.constant 0 : index
    %1 = vector.load %arg2[%c0_1, %c0_2] : memref<64x128xbf16, #tpu.memory_space<vmem>>, vector<64x128xbf16>
    %cst = arith.constant dense<0.000000e+00> : vector<112x128xf32>
    %2 = tpu.matmul %0, %1, %cst {dimension_numbers = #tpu.dot_dimension_numbers<[1], [0], [0], [1], [0, 0, 1, 1], [], []>} : vector<112x64xbf16>, vector<64x128xbf16>, vector<112x128xf32> -> vector<112x128xf32>
    %3 = arith.truncf %2 : vector<112x128xf32> to vector<112x128xbf16>
    %c0_3 = arith.constant 0 : index
    %c0_4 = arith.constant 0 : index
    %4 = vector.load %arg3[%c0_3, %c0_4] : memref<112x128xbf16, #tpu.memory_space<vmem>>, vector<112x128xbf16>
    tpu.vector_store %arg3[%c0_3, %c0_4], %3 {strides = array<i32>} : memref<112x128xbf16, #tpu.memory_space<vmem>>, vector<112x128xbf16>,
    %cst_5 = arith.constant dense<0.000000e+00> : vector<128xf32>
    %5 = vector.multi_reduction <add>, %2, %cst_5 [0] : vector<112x128xf32> to vector<128xf32>
    %6 = vector.shape_cast %5 : vector<128xf32> to vector<1x128xf32>
    %7 = arith.mulf %2, %2 : vector<112x128xf32>
    %cst_6 = arith.constant dense<0.000000e+00> : vector<128xf32>
    %8 = vector.multi_reduction <add>, %7, %cst_6 [0] : vector<112x128xf32> to vector<128xf32>
    %9 = vector.shape_cast %8 : vector<128xf32> to vector<1x128xf32>
    %cst_7 = arith.constant 0.000000e+00 : f32
    %10 = vector.broadcast %cst_7 : f32 to vector<6x128xf32>
    %11 = tpu.concatenate %6, %9, %10 in 0 : vector<1x128xf32>, vector<1x128xf32>, vector<6x128xf32> -> vector<8x128xf32>
    %c0_8 = arith.constant 0 : index
    %c0_9 = arith.constant 0 : index
    %c0_10 = arith.constant 0 : index
    %12 = vector.load %arg4[%c0_8, %c0_9, %c0_10] : memref<1x8x128xf32, #tpu.memory_space<vmem>>, vector<1x8x128xf32>
    %13 = vector.shape_cast %12 : vector<1x8x128xf32> to vector<8x128xf32>
    %14 = vector.shape_cast %11 : vector<8x128xf32> to vector<1x8x128xf32>
    tpu.vector_store %arg4[%c0_8, %c0_9, %c0_10], %14 {strides = array<i32>} : memref<1x8x128xf32, #tpu.memory_space<vmem>>, vector<1x8x128xf32>,
    return
  }
  func.func @transform_0(%arg0: i32) -> (i32, i32) {
    %c0_i32 = arith.constant 0 : i32
    %c0_i32_0 = arith.constant 0 : i32
    return %arg0, %c0_i32 : i32, i32
  }
  func.func @transform_1(%arg0: i32) -> (i32, i32) {
    %c0_i32 = arith.constant 0 : i32
    %c0_i32_0 = arith.constant 0 : i32
    %c0_i32_1 = arith.constant 0 : i32
    return %c0_i32, %c0_i32_0 : i32, i32
  }
  func.func @transform_2(%arg0: i32) -> (i32, i32) {
    %c0_i32 = arith.constant 0 : i32
    %c0_i32_0 = arith.constant 0 : i32
    return %arg0, %c0_i32 : i32, i32
  }
  func.func @transform_3(%arg0: i32) -> (i32, i32, i32) {
    %c0_i32 = arith.constant 0 : i32
    %c0_i32_0 = arith.constant 0 : i32
    %c0_i32_1 = arith.constant 0 : i32
    return %arg0, %c0_i32, %c0_i32_0 : i32, i32, i32
  }
}

module attributes {stable_mosaic.version = 11 : i64} {
  func.func @_conv_stats_kernel(%arg0: i32, %arg1: memref<112x64xbf16, #tpu.memory_space<vmem>>, %arg2: memref<64x128xbf16, #tpu.memory_space<vmem>>, %arg3: memref<112x128xbf16, #tpu.memory_space<vmem>>, %arg4: memref<1x8x128xf32, #tpu.memory_space<vmem>>) attributes {dimension_semantics = [#tpu.dimension_semantics<parallel>], iteration_bounds = array<i64: 1>, scalar_prefetch = 0 : i64, scratch_operands = 0 : i64, tpu.core_type = #tpu.core_type<tc>, window_params = [{transform_indices = @transform_0, window_bounds = array<i64: 112, 64>}, {pipeline_mode = #tpu.pipeline_mode<synchronous>, transform_indices = @transform_1, window_bounds = array<i64: 64, 128>}, {transform_indices = @transform_2, window_bounds = array<i64: 112, 128>}, {transform_indices = @transform_3, window_bounds = array<i64: 1, 8, 128>}]} {
    %c0 = arith.constant 0 : index
    %c0_0 = arith.constant 0 : index
    %0 = vector.load %arg1[%c0, %c0_0] : memref<112x64xbf16, #tpu.memory_space<vmem>>, vector<112x64xbf16>
    %c0_1 = arith.constant 0 : index
    %c0_2 = arith.constant 0 : index
    %1 = vector.load %arg2[%c0_1, %c0_2] : memref<64x128xbf16, #tpu.memory_space<vmem>>, vector<64x128xbf16>
    %cst = arith.constant dense<0.000000e+00> : vector<112x128xf32>
    %2 = tpu.matmul %0, %1, %cst {dimension_numbers = #tpu.dot_dimension_numbers<[1], [0], [0], [1], [0, 0, 1, 1], [], []>} : vector<112x64xbf16>, vector<64x128xbf16>, vector<112x128xf32> -> vector<112x128xf32>
    %3 = arith.truncf %2 : vector<112x128xf32> to vector<112x128xbf16>
    %c0_3 = arith.constant 0 : index
    %c0_4 = arith.constant 0 : index
    %4 = vector.load %arg3[%c0_3, %c0_4] : memref<112x128xbf16, #tpu.memory_space<vmem>>, vector<112x128xbf16>
    tpu.vector_store %arg3[%c0_3, %c0_4], %3 {strides = array<i32>} : memref<112x128xbf16, #tpu.memory_space<vmem>>, vector<112x128xbf16>,
    %cst_5 = arith.constant dense<0.000000e+00> : vector<128xf32>
    %5 = vector.multi_reduction <add>, %2, %cst_5 [0] : vector<112x128xf32> to vector<128xf32>
    %6 = vector.shape_cast %5 : vector<128xf32> to vector<1x128xf32>
    %7 = arith.mulf %2, %2 : vector<112x128xf32>
    %cst_6 = arith.constant dense<0.000000e+00> : vector<128xf32>
    %8 = vector.multi_reduction <add>, %7, %cst_6 [0] : vector<112x128xf32> to vector<128xf32>
    %9 = vector.shape_cast %8 : vector<128xf32> to vector<1x128xf32>
    %cst_7 = arith.constant 0.000000e+00 : f32
    %10 = vector.broadcast %cst_7 : f32 to vector<6x128xf32>
    %11 = tpu.concatenate %6, %9, %10 in 0 : vector<1x128xf32>, vector<1x128xf32>, vector<6x128xf32> -> vector<8x128xf32>
    %c0_8 = arith.constant 0 : index
    %c0_9 = arith.constant 0 : index
    %c0_10 = arith.constant 0 : index
    %12 = vector.load %arg4[%c0_8, %c0_9, %c0_10] : memref<1x8x128xf32, #tpu.memory_space<vmem>>, vector<1x8x128xf32>
    %13 = vector.shape_cast %12 : vector<1x8x128xf32> to vector<8x128xf32>
    %14 = vector.shape_cast %11 : vector<8x128xf32> to vector<1x8x128xf32>
    tpu.vector_store %arg4[%c0_8, %c0_9, %c0_10], %14 {strides = array<i32>} : memref<1x8x128xf32, #tpu.memory_space<vmem>>, vector<1x8x128xf32>,
    return
  }
  func.func @transform_0(%arg0: i32) -> (i32, i32) {
    %c0_i32 = arith.constant 0 : i32
    %c0_i32_0 = arith.constant 0 : i32
    return %arg0, %c0_i32 : i32, i32
  }
  func.func @transform_1(%arg0: i32) -> (i32, i32) {
    %c0_i32 = arith.constant 0 : i32
    %c0_i32_0 = arith.constant 0 : i32
    %c0_i32_1 = arith.constant 0 : i32
    return %c0_i32, %c0_i32_0 : i32, i32
  }
  func.func @transform_2(%arg0: i32) -> (i32, i32) {
    %c0_i32 = arith.constant 0 : i32
    %c0_i32_0 = arith.constant 0 : i32
    return %arg0, %c0_i32 : i32, i32
  }
  func.func @transform_3(%arg0: i32) -> (i32, i32, i32) {
    %c0_i32 = arith.constant 0 : i32
    %c0_i32_0 = arith.constant 0 : i32
    %c0_i32_1 = arith.constant 0 : i32
    return %arg0, %c0_i32, %c0_i32_0 : i32, i32, i32
  }
}

</mosaic_0001>

<llo_original>
// kernel: tpu_custom_call.1
$region0: #{tpu_custom_call.1}
  #allocation0 [shape = 'u32[]', space=smem, size = 0x4, offset = 0x4, fixed_abs, tag = 'smem constant byte address 0x4 - core index']
  #allocation1 [shape = 'u32[144,128]{1,0:T(1,128)}', space=vmem, size = 0x12000, scoped, tag = 'internal scratch']
  %s0 = inlined_call_operand.vmem [shape: bf16[112,64], index: 0, kind: input, shape index: {}]
  %s1 = inlined_call_operand.vmem [shape: bf16[64,128], index: 1, kind: input, shape index: {}]
  %s2 = inlined_call_operand.hbm [shape: bf16[112,128], index: 2, kind: output, shape index: {0}]
  %s3 = inlined_call_operand.hbm [shape: f32[1,8,128], index: 3, kind: output, shape index: {1}]
  %4 = xla_tuple %s2, %s3
  %s5 = sld [smem:[#allocation0]]
  $region26: #{tpu_custom_call.1} parent=0
    _
  %s7 = ssub.s32 1, %s5
  %s8 = scalar_select 0, %s7, %s5
  $region1: #{tpu_custom_call.1} parent=0
    #allocation2 [shape = 'u8[28672]{0}', space=vmem, size = 0x7000, scoped, tag = 'output window, operand 0, single buffered']
    #allocation3 [shape = 's32[1]{0}', space=sflag, size = 0x4, scoped, tag = 'scoped memory for tpu_custom_call.1']
    #allocation4 [shape = 'u8[4096]{0}', space=vmem, size = 0x1000, scoped, tag = 'output window, operand 1, single buffered']
    #allocation5 [shape = 's32[1]{0}', space=sflag, size = 0x4, scoped, tag = 'scoped memory for tpu_custom_call.1']
    %9 = vsyncpa [#allocation3], 0
    %10 = vsyncpa [#allocation5], 0
    // Predicated region
    $region2: #{tpu_custom_call.1} parent=1 // pred_check
      _
    $region3: #{tpu_custom_call.1} parent=1 // pred_check_branch
      %12 = sbr.rel (0) target = $region5
    $region4: #{tpu_custom_call.1} parent=1 // pred_region
      _
    $region5: #{tpu_custom_call.1} parent=1 // pred_fallthru
      _
    // Predicated region
    $region6: #{tpu_custom_call.1} parent=1 // pred_check
      _
    $region7: #{tpu_custom_call.1} parent=1 // pred_check_branch
      %14 = sbr.rel (0) target = $region9
    $region8: #{tpu_custom_call.1} parent=1 // pred_region
      _
    $region9: #{tpu_custom_call.1} parent=1 // pred_fallthru
      _
    %v16 = vld [vmem:[%s0] sm:$0xf]
    %v17 = vld [vmem:[%s0 + $0x4] sm:$0xf]
    %v18 = vld [vmem:[%s0 + $0x8] sm:$0xf]
    %v19 = vld [vmem:[%s0 + $0xc] sm:$0xf]
    %v20 = vld [vmem:[%s0 + $0x10] sm:$0xf]
    %v21 = vld [vmem:[%s0 + $0x14] sm:$0xf]
    %v22 = vld [vmem:[%s0 + $0x18] sm:$0xf]
    %v23 = vld [vmem:[%s0 + $0x1c] sm:$0xf]
    %v24 = vld [vmem:[%s0 + $0x20] sm:$0xf]
    %v25 = vld [vmem:[%s0 + $0x24] sm:$0xf]
    %v26 = vld [vmem:[%s0 + $0x28] sm:$0xf]
    %v27 = vld [vmem:[%s0 + $0x2c] sm:$0xf]
    %v28 = vld [vmem:[%s0 + $0x30] sm:$0xf]
    %v29 = vld [vmem:[%s0 + $0x34] sm:$0xf]
    %v30 = vld [vmem:[%s1] sm:$0xf]
    %v31 = vld [vmem:[%s1 + $0x4] sm:$0xf]
    %v32 = vld [vmem:[%s1 + $0x8] sm:$0xf]
    %v33 = vld [vmem:[%s1 + $0xc] sm:$0xf]
    %v34 = vld [vmem:[%s1 + $0x10] sm:$0xf]
    %v35 = vld [vmem:[%s1 + $0x14] sm:$0xf]
    %v36 = vld [vmem:[%s1 + $0x18] sm:$0xf]
    %v37 = vld [vmem:[%s1 + $0x1c] sm:$0xf]
    %v52 = vunpack.c.l.b16 %v16
    %v53 = vunpack.c.l.b16 %v17
    %v54 = vunpack.c.l.b16 %v18
    %v55 = vunpack.c.l.b16 %v19
    %v56 = vunpack.c.l.b16 %v20
    %v57 = vunpack.c.l.b16 %v21
    %v58 = vunpack.c.l.b16 %v22
    %v59 = vunpack.c.l.b16 %v23
    %v60 = vunpack.c.l.b16 %v24
    %v61 = vunpack.c.l.b16 %v25
    %v62 = vunpack.c.l.b16 %v26
    %v63 = vunpack.c.l.b16 %v27
    %v64 = vunpack.c.l.b16 %v28
    %v65 = vunpack.c.l.b16 %v29
    %v66 = vpack.c.b16 %v53, %v52
    %v67 = vpack.c.b16 %v55, %v54
    %v68 = vpack.c.b16 %v57, %v56
    %v69 = vpack.c.b16 %v59, %v58
    %v70 = vpack.c.b16 %v61, %v60
    %v71 = vpack.c.b16 %v63, %v62
    %v72 = vpack.c.b16 %v65, %v64
    %v81 = vunpack.c.l.b16 %v30
    %v82 = vunpack.c.l.b16 %v31
    %v83 = vunpack.c.l.b16 %v32
    %v84 = vunpack.c.l.b16 %v33
    %v85 = vunpack.c.l.b16 %v34
    %v86 = vunpack.c.l.b16 %v35
    %v87 = vunpack.c.l.b16 %v36
    %v88 = vunpack.c.l.b16 %v37
    %v89 = vpack.c.b16 %v82, %v81
    %v90 = vpack.c.b16 %v84, %v83
    %v91 = vpack.c.b16 %v86, %v85
    %v92 = vpack.c.b16 %v88, %v87
    %vm97 = vcmask 523264
    %v99 = vsel %vm97, %v66, 0
    %v102 = vsel %vm97, %v67, 0
    %v105 = vsel %vm97, %v68, 0
    %v108 = vsel %vm97, %v69, 0
    %v111 = vsel %vm97, %v70, 0
    %v114 = vsel %vm97, %v71, 0
    %v117 = vsel %vm97, %v72, 0
    %119 = vmatprep.subr.bf16.mxu0 0
    %120 = vmatpush1.bf16.msra.mxu0 %v89
    %121 = vmatprep.subr.bf16.mxu0 0
    %122 = vmatpush1.bf16.msra.mxu0 %v90
    %123 = vmatprep.subr.bf16.mxu0 0
    %124 = vmatpush1.bf16.msra.mxu0 %v91
    %125 = vmatprep.subr.bf16.mxu0 0
    %126 = vmatpush1.bf16.msra.mxu0 %v92
    %127 = vmatprep.subr.bf16.mxu0 0
    %128 = vmatpush1.bf16.msra.mxu0 0
    %129 = vmatprep.subr.bf16.mxu0 0
    %130 = vmatpush1.bf16.msra.mxu0 0
    %131 = vmatprep.subr.bf16.mxu0 0
    %132 = vmatpush1.bf16.msra.mxu0 0
    %133 = vmatprep.subr.bf16.mxu0 0
    %134 = vmatpush1.bf16.msra.mxu0 0
    %135 = vmatprep.subr.bf16.mxu0 0
    %136 = vmatpush1.bf16.msra.mxu0 0
    %137 = vmatprep.subr.bf16.mxu0 0
    %138 = vmatpush1.bf16.msra.mxu0 0
    %139 = vmatprep.subr.bf16.mxu0 0
    %140 = vmatpush1.bf16.msra.mxu0 0
    %141 = vmatprep.subr.bf16.mxu0 0
    %142 = vmatpush1.bf16.msra.mxu0 0
    %143 = vmatprep.subr.bf16.mxu0 0
    %144 = vmatpush1.bf16.msra.mxu0 0
    %145 = vmatprep.subr.bf16.mxu0 0
    %146 = vmatpush1.bf16.msra.mxu0 0
    %147 = vmatprep.subr.bf16.mxu0 0
    %148 = vmatpush1.bf16.msra.mxu0 0
    %149 = vmatprep.subr.bf16.mxu0 0
    %150 = vmatpush1.bf16.msra.mxu0 0
    %151 = vmatprep.mubr.bf16.mxu0 0
    %152 = vmatmul.mubr.bf16.gmra.mrb[0].mxu0 %v99
    %v153 = vpop.f32.mrb[0].mxu0
    %v154 = vadd.f32 0.0, %v153
    %v155 = vpop.f32.mrb[0].mxu0
    %v156 = vpop.f32.mrb[0].mxu0
    %v157 = vadd.f32 0.0, %v156
    %v158 = vpop.f32.mrb[0].mxu0
    %159 = vmatprep.mubr.bf16.mxu0 0
    %160 = vmatmul.mubr.bf16.gmra.mrb[0].mxu0 %v102
    %v161 = vpop.f32.mrb[0].mxu0
    %v162 = vadd.f32 0.0, %v161
    %v163 = vpop.f32.mrb[0].mxu0
    %v164 = vpop.f32.mrb[0].mxu0
    %v165 = vadd.f32 0.0, %v164
    %v166 = vpop.f32.mrb[0].mxu0
    %167 = vmatprep.mubr.bf16.mxu0 0
    %168 = vmatmul.mubr.bf16.gmra.mrb[0].mxu0 %v105
    %v169 = vpop.f32.mrb[0].mxu0
    %v170 = vadd.f32 0.0, %v169
    %v171 = vpop.f32.mrb[0].mxu0
    %v172 = vpop.f32.mrb[0].mxu0
    %v173 = vadd.f32 0.0, %v172
    %v174 = vpop.f32.mrb[0].mxu0
    %175 = vmatprep.mubr.bf16.mxu0 0
    %176 = vmatmul.mubr.bf16.gmra.mrb[0].mxu0 %v108
    %v177 = vpop.f32.mrb[0].mxu0
    %v178 = vadd.f32 0.0, %v177
    %v179 = vpop.f32.mrb[0].mxu0
    %v180 = vpop.f32.mrb[0].mxu0
    %v181 = vadd.f32 0.0, %v180
    %v182 = vpop.f32.mrb[0].mxu0
    %183 = vmatprep.mubr.bf16.mxu0 0
    %184 = vmatmul.mubr.bf16.gmra.mrb[0].mxu0 %v111
    %v185 = vpop.f32.mrb[0].mxu0
    %v186 = vadd.f32 0.0, %v185
    %v187 = vpop.f32.mrb[0].mxu0
    %v188 = vpop.f32.mrb[0].mxu0
    %v189 = vadd.f32 0.0, %v188
    %v190 = vpop.f32.mrb[0].mxu0
    %191 = vmatprep.mubr.bf16.mxu0 0
    %192 = vmatmul.mubr.bf16.gmra.mrb[0].mxu0 %v114
    %v193 = vpop.f32.mrb[0].mxu0
    %v194 = vadd.f32 0.0, %v193
    %v195 = vpop.f32.mrb[0].mxu0
    %v196 = vpop.f32.mrb[0].mxu0
    %v197 = vadd.f32 0.0, %v196
    %v198 = vpop.f32.mrb[0].mxu0
    %199 = vmatprep.mubr.bf16.mxu0 0
    %200 = vmatmul.mubr.bf16.gmra.mrb[0].mxu0 %v117
    %v201 = vpop.f32.mrb[0].mxu0
    %v202 = vadd.f32 0.0, %v201
    %v203 = vpop.f32.mrb[0].mxu0
    %v204 = vpop.f32.mrb[0].mxu0
    %v205 = vadd.f32 0.0, %v204
    %v206 = vpop.f32.mrb[0].mxu0
    %207 = vdwg.mxu0
    %v208 = vpack.c.bf16 %v157, %v154
    %v209 = vpack.c.bf16 %v165, %v162
    %v210 = vpack.c.bf16 %v173, %v170
    %v211 = vpack.c.bf16 %v181, %v178
    %v212 = vpack.c.bf16 %v189, %v186
    %v213 = vpack.c.bf16 %v197, %v194
    %v214 = vpack.c.bf16 %v205, %v202
    %v222 = vunpack.c.l.b16 %v208
    %v223 = vunpack.c.h.b16 %v208
    %v224 = vunpack.c.l.b16 %v209
    %v225 = vunpack.c.h.b16 %v209
    %v226 = vunpack.c.l.b16 %v210
    %v227 = vunpack.c.h.b16 %v210
    %v228 = vunpack.c.l.b16 %v211
    %v229 = vunpack.c.h.b16 %v211
    %v230 = vunpack.c.l.b16 %v212
    %v231 = vunpack.c.h.b16 %v212
    %v232 = vunpack.c.l.b16 %v213
    %v233 = vunpack.c.h.b16 %v213
    %v234 = vunpack.c.l.b16 %v214
    %v235 = vunpack.c.h.b16 %v214
    %v236 = vpack.c.b16 %v222, %v222
    %v237 = vpack.c.b16 %v223, %v223
    %v238 = vpack.c.b16 %v224, %v224
    %v239 = vpack.c.b16 %v225, %v225
    %v240 = vpack.c.b16 %v226, %v226
    %v241 = vpack.c.b16 %v227, %v227
    %v242 = vpack.c.b16 %v228, %v228
    %v243 = vpack.c.b16 %v229, %v229
    %v244 = vpack.c.b16 %v230, %v230
    %v245 = vpack.c.b16 %v231, %v231
    %v246 = vpack.c.b16 %v232, %v232
    %v247 = vpack.c.b16 %v233, %v233
    %v248 = vpack.c.b16 %v234, %v234
    %v249 = vpack.c.b16 %v235, %v235
    %264 = vst [vmem:[#allocation2] sm:$0xf] %v236
    %265 = vst [vmem:[#allocation2 + $0x4] sm:$0xf] %v237
    %266 = vst [vmem:[#allocation2 + $0x8] sm:$0xf] %v238
    %267 = vst [vmem:[#allocation2 + $0xc] sm:$0xf] %v239
    %268 = vst [vmem:[#allocation2 + $0x10] sm:$0xf] %v240
    %269 = vst [vmem:[#allocation2 + $0x14] sm:$0xf] %v241
    %270 = vst [vmem:[#allocation2 + $0x18] sm:$0xf] %v242
    %271 = vst [vmem:[#allocation2 + $0x1c] sm:$0xf] %v243
    %272 = vst [vmem:[#allocation2 + $0x20] sm:$0xf] %v244
    %273 = vst [vmem:[#allocation2 + $0x24] sm:$0xf] %v245
    %274 = vst [vmem:[#allocation2 + $0x28] sm:$0xf] %v246
    %275 = vst [vmem:[#allocation2 + $0x2c] sm:$0xf] %v247
    %276 = vst [vmem:[#allocation2 + $0x30] sm:$0xf] %v248
    %277 = vst [vmem:[#allocation2 + $0x34] sm:$0xf] %v249
    %v278 = vadd.f32 %v154, %v157
    %v279 = vadd.f32 %v278, %v162
    %v280 = vadd.f32 %v279, %v165
    %v281 = vadd.f32 %v280, %v170
    %v282 = vadd.f32 %v281, %v173
    %v283 = vadd.f32 %v282, %v178
    %v284 = vadd.f32 %v283, %v181
    %v285 = vadd.f32 %v284, %v186
    %v286 = vadd.f32 %v285, %v189
    %v287 = vadd.f32 %v286, %v194
    %v288 = vadd.f32 %v287, %v197
    %v289 = vadd.f32 %v288, %v202
    %v290 = vadd.f32 %v289, %v205
    %v291 = vrot.slane %v290, 4
    %v292 = vadd.f32 %v290, %v291
    %v293 = vrot.slane %v292, 2
    %v294 = vadd.f32 %v292, %v293
    %v295 = vrot.slane %v294, 1
    %v296 = vadd.f32 %v294, %v295
    %v297 = vmul.f32 %v154, %v154
    %v298 = vmul.f32 %v157, %v157
    %v299 = vmul.f32 %v162, %v162
    %v300 = vmul.f32 %v165, %v165
    %v301 = vmul.f32 %v170, %v170
    %v302 = vmul.f32 %v173, %v173
    %v303 = vmul.f32 %v178, %v178
    %v304 = vmul.f32 %v181, %v181
    %v305 = vmul.f32 %v186, %v186
    %v306 = vmul.f32 %v189, %v189
    %v307 = vmul.f32 %v194, %v194
    %v308 = vmul.f32 %v197, %v197
    %v309 = vmul.f32 %v202, %v202
    %v310 = vmul.f32 %v205, %v205
    %v311 = vadd.f32 %v297, %v298
    %v312 = vadd.f32 %v311, %v299
    %v313 = vadd.f32 %v312, %v300
    %v314 = vadd.f32 %v313, %v301
    %v315 = vadd.f32 %v314, %v302
    %v316 = vadd.f32 %v315, %v303
    %v317 = vadd.f32 %v316, %v304
    %v318 = vadd.f32 %v317, %v305
    %v319 = vadd.f32 %v318, %v306
    %v320 = vadd.f32 %v319, %v307
    %v321 = vadd.f32 %v320, %v308
    %v322 = vadd.f32 %v321, %v309
    %v323 = vadd.f32 %v322, %v310
    %v324 = vrot.slane %v323, 4
    %v325 = vadd.f32 %v323, %v324
    %v326 = vrot.slane %v325, 2
    %v327 = vadd.f32 %v325, %v326
    %v328 = vrot.slane %v327, 1
    %v329 = vadd.f32 %v327, %v328
    %vm330 = vcmask 1040384
    %v331 = vsel %vm330, %v296, %v329
    %vm332 = vcmask 1041408
    %v333 = vsel %vm332, %v331, 0.0
    %334 = vst [vmem:[#allocation4] sm:$0xff] %v333
    // Predicated region
    $region10: #{tpu_custom_call.1} parent=1 // pred_check
      _
    $region11: #{tpu_custom_call.1} parent=1 // pred_check_branch
      %336 = sbr.rel (0) target = $region13
    $region12: #{tpu_custom_call.1} parent=1 // pred_region
      %s338 = ssub.s32 896, 896
      %339 = vsyncadd [#allocation3], %s338
      %s340 = sshll.u32 [#allocation2], 4
      %s341 = int_to_ptr.vmem [resolvable:$true] %s340
      %346 = dma.vmem_to_hbm [thread:$0]  %s341, 896, %s2, [#allocation3], 64, 64, 4
    $region13: #{tpu_custom_call.1} parent=1 // pred_fallthru
      _
    // Predicated region
    $region14: #{tpu_custom_call.1} parent=1 // pred_check
      _
    $region15: #{tpu_custom_call.1} parent=1 // pred_check_branch
      %348 = sbr.rel (0) target = $region17
    $region16: #{tpu_custom_call.1} parent=1 // pred_region
      %s350 = ssub.s32 128, 128
      %351 = vsyncadd [#allocation5], %s350
      %s353 = sshll.u32 [#allocation4], 4
      %s354 = int_to_ptr.vmem [resolvable:$true] %s353
      %356 = dma.vmem_to_hbm [thread:$0]  %s354, 128, %s3, [#allocation5]
    $region17: #{tpu_custom_call.1} parent=1 // pred_fallthru
      _
    // Predicated region
    $region18: #{tpu_custom_call.1} parent=1 // pred_check
      _
    $region19: #{tpu_custom_call.1} parent=1 // pred_check_branch
      %358 = sbr.rel (0) target = $region21
    $region20: #{tpu_custom_call.1} parent=1 // pred_region
      %359 = dma.done [#allocation3], 896
    $region21: #{tpu_custom_call.1} parent=1 // pred_fallthru
      _
    // Predicated region
    $region22: #{tpu_custom_call.1} parent=1 // pred_check
      _
    $region23: #{tpu_custom_call.1} parent=1 // pred_check_branch
      %361 = sbr.rel (0) target = $region25
    $region24: #{tpu_custom_call.1} parent=1 // pred_region
      %362 = dma.done [#allocation5], 128
    $region25: #{tpu_custom_call.1} parent=1 // pred_fallthru
      _
    %363 = vsyncpa [#allocation3], 1
    %364 = vsyncpa [#allocation5], 1

// kernel: tpu_custom_call.1
$region0: #{tpu_custom_call.1}
  #allocation0 [shape = 'u32[]', space=smem, size = 0x4, offset = 0x4, fixed_abs, tag = 'smem constant byte address 0x4 - core index']
  #allocation1 [shape = 'u32[144,128]{1,0:T(1,128)}', space=vmem, size = 0x12000, scoped, tag = 'internal scratch']
  %s0 = inlined_call_operand.vmem [shape: bf16[112,64], index: 0, kind: input, shape index: {}]
  %s1 = inlined_call_operand.vmem [shape: bf16[64,128], index: 1, kind: input, shape index: {}]
  %s2 = inlined_call_operand.hbm [shape: bf16[112,128], index: 2, kind: output, shape index: {0}]
  %s3 = inlined_call_operand.hbm [shape: f32[1,8,128], index: 3, kind: output, shape index: {1}]
  %4 = xla_tuple %s2, %s3
  %s5 = sld [smem:[#allocation0]]
  $region26: #{tpu_custom_call.1} parent=0
    _
  %s7 = ssub.s32 1, %s5
  %s8 = scalar_select 0, %s7, %s5
  $region1: #{tpu_custom_call.1} parent=0
    #allocation2 [shape = 'u8[28672]{0}', space=vmem, size = 0x7000, scoped, tag = 'output window, operand 0, single buffered']
    #allocation3 [shape = 's32[1]{0}', space=sflag, size = 0x4, scoped, tag = 'scoped memory for tpu_custom_call.1']
    #allocation4 [shape = 'u8[4096]{0}', space=vmem, size = 0x1000, scoped, tag = 'output window, operand 1, single buffered']
    #allocation5 [shape = 's32[1]{0}', space=sflag, size = 0x4, scoped, tag = 'scoped memory for tpu_custom_call.1']
    %9 = vsyncpa [#allocation3], 0
    %10 = vsyncpa [#allocation5], 0
    // Predicated region
    $region2: #{tpu_custom_call.1} parent=1 // pred_check
      _
    $region3: #{tpu_custom_call.1} parent=1 // pred_check_branch
      %12 = sbr.rel (0) target = $region5
    $region4: #{tpu_custom_call.1} parent=1 // pred_region
      _
    $region5: #{tpu_custom_call.1} parent=1 // pred_fallthru
      _
    // Predicated region
    $region6: #{tpu_custom_call.1} parent=1 // pred_check
      _
    $region7: #{tpu_custom_call.1} parent=1 // pred_check_branch
      %14 = sbr.rel (0) target = $region9
    $region8: #{tpu_custom_call.1} parent=1 // pred_region
      _
    $region9: #{tpu_custom_call.1} parent=1 // pred_fallthru
      _
    %v16 = vld [vmem:[%s0] sm:$0xf]
    %v17 = vld [vmem:[%s0 + $0x4] sm:$0xf]
    %v18 = vld [vmem:[%s0 + $0x8] sm:$0xf]
    %v19 = vld [vmem:[%s0 + $0xc] sm:$0xf]
    %v20 = vld [vmem:[%s0 + $0x10] sm:$0xf]
    %v21 = vld [vmem:[%s0 + $0x14] sm:$0xf]
    %v22 = vld [vmem:[%s0 + $0x18] sm:$0xf]
    %v23 = vld [vmem:[%s0 + $0x1c] sm:$0xf]
    %v24 = vld [vmem:[%s0 + $0x20] sm:$0xf]
    %v25 = vld [vmem:[%s0 + $0x24] sm:$0xf]
    %v26 = vld [vmem:[%s0 + $0x28] sm:$0xf]
    %v27 = vld [vmem:[%s0 + $0x2c] sm:$0xf]
    %v28 = vld [vmem:[%s0 + $0x30] sm:$0xf]
    %v29 = vld [vmem:[%s0 + $0x34] sm:$0xf]
    %v30 = vld [vmem:[%s1] sm:$0xf]
    %v31 = vld [vmem:[%s1 + $0x4] sm:$0xf]
    %v32 = vld [vmem:[%s1 + $0x8] sm:$0xf]
    %v33 = vld [vmem:[%s1 + $0xc] sm:$0xf]
    %v34 = vld [vmem:[%s1 + $0x10] sm:$0xf]
    %v35 = vld [vmem:[%s1 + $0x14] sm:$0xf]
    %v36 = vld [vmem:[%s1 + $0x18] sm:$0xf]
    %v37 = vld [vmem:[%s1 + $0x1c] sm:$0xf]
    %v52 = vunpack.c.l.b16 %v16
    %v53 = vunpack.c.l.b16 %v17
    %v54 = vunpack.c.l.b16 %v18
    %v55 = vunpack.c.l.b16 %v19
    %v56 = vunpack.c.l.b16 %v20
    %v57 = vunpack.c.l.b16 %v21
    %v58 = vunpack.c.l.b16 %v22
    %v59 = vunpack.c.l.b16 %v23
    %v60 = vunpack.c.l.b16 %v24
    %v61 = vunpack.c.l.b16 %v25
    %v62 = vunpack.c.l.b16 %v26
    %v63 = vunpack.c.l.b16 %v27
    %v64 = vunpack.c.l.b16 %v28
    %v65 = vunpack.c.l.b16 %v29
    %v66 = vpack.c.b16 %v53, %v52
    %v67 = vpack.c.b16 %v55, %v54
    %v68 = vpack.c.b16 %v57, %v56
    %v69 = vpack.c.b16 %v59, %v58
    %v70 = vpack.c.b16 %v61, %v60
    %v71 = vpack.c.b16 %v63, %v62
    %v72 = vpack.c.b16 %v65, %v64
    %v81 = vunpack.c.l.b16 %v30
    %v82 = vunpack.c.l.b16 %v31
    %v83 = vunpack.c.l.b16 %v32
    %v84 = vunpack.c.l.b16 %v33
    %v85 = vunpack.c.l.b16 %v34
    %v86 = vunpack.c.l.b16 %v35
    %v87 = vunpack.c.l.b16 %v36
    %v88 = vunpack.c.l.b16 %v37
    %v89 = vpack.c.b16 %v82, %v81
    %v90 = vpack.c.b16 %v84, %v83
    %v91 = vpack.c.b16 %v86, %v85
    %v92 = vpack.c.b16 %v88, %v87
    %vm97 = vcmask 523264
    %v99 = vsel %vm97, %v66, 0
    %v102 = vsel %vm97, %v67, 0
    %v105 = vsel %vm97, %v68, 0
    %v108 = vsel %vm97, %v69, 0
    %v111 = vsel %vm97, %v70, 0
    %v114 = vsel %vm97, %v71, 0
    %v117 = vsel %vm97, %v72, 0
    %119 = vmatprep.subr.bf16.mxu0 0
    %120 = vmatpush1.bf16.msra.mxu0 %v89
    %121 = vmatprep.subr.bf16.mxu0 0
    %122 = vmatpush1.bf16.msra.mxu0 %v90
    %123 = vmatprep.subr.bf16.mxu0 0
    %124 = vmatpush1.bf16.msra.mxu0 %v91
    %125 = vmatprep.subr.bf16.mxu0 0
    %126 = vmatpush1.bf16.msra.mxu0 %v92
    %127 = vmatprep.subr.bf16.mxu0 0
    %128 = vmatpush1.bf16.msra.mxu0 0
    %129 = vmatprep.subr.bf16.mxu0 0
    %130 = vmatpush1.bf16.msra.mxu0 0
    %131 = vmatprep.subr.bf16.mxu0 0
    %132 = vmatpush1.bf16.msra.mxu0 0
    %133 = vmatprep.subr.bf16.mxu0 0
    %134 = vmatpush1.bf16.msra.mxu0 0
    %135 = vmatprep.subr.bf16.mxu0 0
    %136 = vmatpush1.bf16.msra.mxu0 0
    %137 = vmatprep.subr.bf16.mxu0 0
    %138 = vmatpush1.bf16.msra.mxu0 0
    %139 = vmatprep.subr.bf16.mxu0 0
    %140 = vmatpush1.bf16.msra.mxu0 0
    %141 = vmatprep.subr.bf16.mxu0 0
    %142 = vmatpush1.bf16.msra.mxu0 0
    %143 = vmatprep.subr.bf16.mxu0 0
    %144 = vmatpush1.bf16.msra.mxu0 0
    %145 = vmatprep.subr.bf16.mxu0 0
    %146 = vmatpush1.bf16.msra.mxu0 0
    %147 = vmatprep.subr.bf16.mxu0 0
    %148 = vmatpush1.bf16.msra.mxu0 0
    %149 = vmatprep.subr.bf16.mxu0 0
    %150 = vmatpush1.bf16.msra.mxu0 0
    %151 = vmatprep.mubr.bf16.mxu0 0
    %152 = vmatmul.mubr.bf16.gmra.mrb[0].mxu0 %v99
    %v153 = vpop.f32.mrb[0].mxu0
    %v154 = vadd.f32 0.0, %v153
    %v155 = vpop.f32.mrb[0].mxu0
    %v156 = vpop.f32.mrb[0].mxu0
    %v157 = vadd.f32 0.0, %v156
    %v158 = vpop.f32.mrb[0].mxu0
    %159 = vmatprep.mubr.bf16.mxu0 0
    %160 = vmatmul.mubr.bf16.gmra.mrb[0].mxu0 %v102
    %v161 = vpop.f32.mrb[0].mxu0
    %v162 = vadd.f32 0.0, %v161
    %v163 = vpop.f32.mrb[0].mxu0
    %v164 = vpop.f32.mrb[0].mxu0
    %v165 = vadd.f32 0.0, %v164
    %v166 = vpop.f32.mrb[0].mxu0
    %167 = vmatprep.mubr.bf16.mxu0 0
    %168 = vmatmul.mubr.bf16.gmra.mrb[0].mxu0 %v105
    %v169 = vpop.f32.mrb[0].mxu0
    %v170 = vadd.f32 0.0, %v169
    %v171 = vpop.f32.mrb[0].mxu0
    %v172 = vpop.f32.mrb[0].mxu0
    %v173 = vadd.f32 0.0, %v172
    %v174 = vpop.f32.mrb[0].mxu0
    %175 = vmatprep.mubr.bf16.mxu0 0
    %176 = vmatmul.mubr.bf16.gmra.mrb[0].mxu0 %v108
    %v177 = vpop.f32.mrb[0].mxu0
    %v178 = vadd.f32 0.0, %v177
    %v179 = vpop.f32.mrb[0].mxu0
    %v180 = vpop.f32.mrb[0].mxu0
    %v181 = vadd.f32 0.0, %v180
    %v182 = vpop.f32.mrb[0].mxu0
    %183 = vmatprep.mubr.bf16.mxu0 0
    %184 = vmatmul.mubr.bf16.gmra.mrb[0].mxu0 %v111
    %v185 = vpop.f32.mrb[0].mxu0
    %v186 = vadd.f32 0.0, %v185
    %v187 = vpop.f32.mrb[0].mxu0
    %v188 = vpop.f32.mrb[0].mxu0
    %v189 = vadd.f32 0.0, %v188
    %v190 = vpop.f32.mrb[0].mxu0
    %191 = vmatprep.mubr.bf16.mxu0 0
    %192 = vmatmul.mubr.bf16.gmra.mrb[0].mxu0 %v114
    %v193 = vpop.f32.mrb[0].mxu0
    %v194 = vadd.f32 0.0, %v193
    %v195 = vpop.f32.mrb[0].mxu0
    %v196 = vpop.f32.mrb[0].mxu0
    %v197 = vadd.f32 0.0, %v196
    %v198 = vpop.f32.mrb[0].mxu0
    %199 = vmatprep.mubr.bf16.mxu0 0
    %200 = vmatmul.mubr.bf16.gmra.mrb[0].mxu0 %v117
    %v201 = vpop.f32.mrb[0].mxu0
    %v202 = vadd.f32 0.0, %v201
    %v203 = vpop.f32.mrb[0].mxu0
    %v204 = vpop.f32.mrb[0].mxu0
    %v205 = vadd.f32 0.0, %v204
    %v206 = vpop.f32.mrb[0].mxu0
    %207 = vdwg.mxu0
    %v208 = vpack.c.bf16 %v157, %v154
    %v209 = vpack.c.bf16 %v165, %v162
    %v210 = vpack.c.bf16 %v173, %v170
    %v211 = vpack.c.bf16 %v181, %v178
    %v212 = vpack.c.bf16 %v189, %v186
    %v213 = vpack.c.bf16 %v197, %v194
    %v214 = vpack.c.bf16 %v205, %v202
    %v222 = vunpack.c.l.b16 %v208
    %v223 = vunpack.c.h.b16 %v208
    %v224 = vunpack.c.l.b16 %v209
    %v225 = vunpack.c.h.b16 %v209
    %v226 = vunpack.c.l.b16 %v210
    %v227 = vunpack.c.h.b16 %v210
    %v228 = vunpack.c.l.b16 %v211
    %v229 = vunpack.c.h.b16 %v211
    %v230 = vunpack.c.l.b16 %v212
    %v231 = vunpack.c.h.b16 %v212
    %v232 = vunpack.c.l.b16 %v213
    %v233 = vunpack.c.h.b16 %v213
    %v234 = vunpack.c.l.b16 %v214
    %v235 = vunpack.c.h.b16 %v214
    %v236 = vpack.c.b16 %v222, %v222
    %v237 = vpack.c.b16 %v223, %v223
    %v238 = vpack.c.b16 %v224, %v224
    %v239 = vpack.c.b16 %v225, %v225
    %v240 = vpack.c.b16 %v226, %v226
    %v241 = vpack.c.b16 %v227, %v227
    %v242 = vpack.c.b16 %v228, %v228
    %v243 = vpack.c.b16 %v229, %v229
    %v244 = vpack.c.b16 %v230, %v230
    %v245 = vpack.c.b16 %v231, %v231
    %v246 = vpack.c.b16 %v232, %v232
    %v247 = vpack.c.b16 %v233, %v233
    %v248 = vpack.c.b16 %v234, %v234
    %v249 = vpack.c.b16 %v235, %v235
    %264 = vst [vmem:[#allocation2] sm:$0xf] %v236
    %265 = vst [vmem:[#allocation2 + $0x4] sm:$0xf] %v237
    %266 = vst [vmem:[#allocation2 + $0x8] sm:$0xf] %v238
    %267 = vst [vmem:[#allocation2 + $0xc] sm:$0xf] %v239
    %268 = vst [vmem:[#allocation2 + $0x10] sm:$0xf] %v240
    %269 = vst [vmem:[#allocation2 + $0x14] sm:$0xf] %v241
    %270 = vst [vmem:[#allocation2 + $0x18] sm:$0xf] %v242
    %271 = vst [vmem:[#allocation2 + $0x1c] sm:$0xf] %v243
    %272 = vst [vmem:[#allocation2 + $0x20] sm:$0xf] %v244
    %273 = vst [vmem:[#allocation2 + $0x24] sm:$0xf] %v245
    %274 = vst [vmem:[#allocation2 + $0x28] sm:$0xf] %v246
    %275 = vst [vmem:[#allocation2 + $0x2c] sm:$0xf] %v247
    %276 = vst [vmem:[#allocation2 + $0x30] sm:$0xf] %v248
    %277 = vst [vmem:[#allocation2 + $0x34] sm:$0xf] %v249
    %v278 = vadd.f32 %v154, %v157
    %v279 = vadd.f32 %v278, %v162
    %v280 = vadd.f32 %v279, %v165
    %v281 = vadd.f32 %v280, %v170
    %v282 = vadd.f32 %v281, %v173
    %v283 = vadd.f32 %v282, %v178
    %v284 = vadd.f32 %v283, %v181
    %v285 = vadd.f32 %v284, %v186
    %v286 = vadd.f32 %v285, %v189
    %v287 = vadd.f32 %v286, %v194
    %v288 = vadd.f32 %v287, %v197
    %v289 = vadd.f32 %v288, %v202
    %v290 = vadd.f32 %v289, %v205
    %v291 = vrot.slane %v290, 4
    %v292 = vadd.f32 %v290, %v291
    %v293 = vrot.slane %v292, 2
    %v294 = vadd.f32 %v292, %v293
    %v295 = vrot.slane %v294, 1
    %v296 = vadd.f32 %v294, %v295
    %v297 = vmul.f32 %v154, %v154
    %v298 = vmul.f32 %v157, %v157
    %v299 = vmul.f32 %v162, %v162
    %v300 = vmul.f32 %v165, %v165
    %v301 = vmul.f32 %v170, %v170
    %v302 = vmul.f32 %v173, %v173
    %v303 = vmul.f32 %v178, %v178
    %v304 = vmul.f32 %v181, %v181
    %v305 = vmul.f32 %v186, %v186
    %v306 = vmul.f32 %v189, %v189
    %v307 = vmul.f32 %v194, %v194
    %v308 = vmul.f32 %v197, %v197
    %v309 = vmul.f32 %v202, %v202
    %v310 = vmul.f32 %v205, %v205
    %v311 = vadd.f32 %v297, %v298
    %v312 = vadd.f32 %v311, %v299
    %v313 = vadd.f32 %v312, %v300
    %v314 = vadd.f32 %v313, %v301
    %v315 = vadd.f32 %v314, %v302
    %v316 = vadd.f32 %v315, %v303
    %v317 = vadd.f32 %v316, %v304
    %v318 = vadd.f32 %v317, %v305
    %v319 = vadd.f32 %v318, %v306
    %v320 = vadd.f32 %v319, %v307
    %v321 = vadd.f32 %v320, %v308
    %v322 = vadd.f32 %v321, %v309
    %v323 = vadd.f32 %v322, %v310
    %v324 = vrot.slane %v323, 4
    %v325 = vadd.f32 %v323, %v324
    %v326 = vrot.slane %v325, 2
    %v327 = vadd.f32 %v325, %v326
    %v328 = vrot.slane %v327, 1
    %v329 = vadd.f32 %v327, %v328
    %vm330 = vcmask 1040384
    %v331 = vsel %vm330, %v296, %v329
    %vm332 = vcmask 1041408
    %v333 = vsel %vm332, %v331, 0.0
    %334 = vst [vmem:[#allocation4] sm:$0xff] %v333
    // Predicated region
    $region10: #{tpu_custom_call.1} parent=1 // pred_check
      _
    $region11: #{tpu_custom_call.1} parent=1 // pred_check_branch
      %336 = sbr.rel (0) target = $region13
    $region12: #{tpu_custom_call.1} parent=1 // pred_region
      %s338 = ssub.s32 896, 896
      %339 = vsyncadd [#allocation3], %s338
      %s340 = sshll.u32 [#allocation2], 4
      %s341 = int_to_ptr.vmem [resolvable:$true] %s340
      %346 = dma.vmem_to_hbm [thread:$0]  %s341, 896, %s2, [#allocation3], 64, 64, 4
    $region13: #{tpu_custom_call.1} parent=1 // pred_fallthru
      _
    // Predicated region
    $region14: #{tpu_custom_call.1} parent=1 // pred_check
      _
    $region15: #{tpu_custom_call.1} parent=1 // pred_check_branch
      %348 = sbr.rel (0) target = $region17
    $region16: #{tpu_custom_call.1} parent=1 // pred_region
      %s350 = ssub.s32 128, 128
      %351 = vsyncadd [#allocation5], %s350
      %s353 = sshll.u32 [#allocation4], 4
      %s354 = int_to_ptr.vmem [resolvable:$true] %s353
      %356 = dma.vmem_to_hbm [thread:$0]  %s354, 128, %s3, [#allocation5]
    $region17: #{tpu_custom_call.1} parent=1 // pred_fallthru
      _
    // Predicated region
    $region18: #{tpu_custom_call.1} parent=1 // pred_check
      _
    $region19: #{tpu_custom_call.1} parent=1 // pred_check_branch
      %358 = sbr.rel (0) target = $region21
    $region20: #{tpu_custom_call.1} parent=1 // pred_region
      %359 = dma.done [#allocation3], 896
    $region21: #{tpu_custom_call.1} parent=1 // pred_fallthru
      _
    // Predicated region
    $region22: #{tpu_custom_call.1} parent=1 // pred_check
      _
    $region23: #{tpu_custom_call.1} parent=1 // pred_check_branch
      %361 = sbr.rel (0) target = $region25
    $region24: #{tpu_custom_call.1} parent=1 // pred_region
      %362 = dma.done [#allocation5], 128
    $region25: #{tpu_custom_call.1} parent=1 // pred_fallthru
      _
    %363 = vsyncpa [#allocation3], 1
    %364 = vsyncpa [#allocation5], 1

</llo_original>
